<compile_context>
chip_gen: v7x
topology: tpu7x:2x2x1
jax: 0.10.0
libtpu: 0.0.40
codegen_flags: <defaults>
</compile_context>

<pallas_src>
import functools

import jax
import jax.numpy as jnp
from jax.experimental import pallas as pl
from jax.experimental.pallas import tpu as pltpu

_SUBLANES = 8
_LANES = 1024                        # lane-dense last dim (multiple of 128)
_GROUP_ELEMS = _SUBLANES * _LANES    # elements per (8, LANES) group
# Budget ~4 MiB of f32-equivalent work per grid step: input tile (<= 4 MiB)
# + on-chip f32 intermediates stay well inside the 32 MiB scoped-VMEM limit
# that is valid on v5e (raised via vmem_limit_bytes), v6e and v7x.
_TILE_ELEMS_BUDGET = (4 * 1024 * 1024) // 4


def _entropy_kernel(x_ref, o_ref, *, eps):
    """One streaming step: o_ref (1,8,L) accumulates the sum of a (TG,8,L) tile."""
    s = pl.program_id(1)

    @pl.when(s == 0)
    def _():
        o_ref[...] = jnp.zeros_like(o_ref)

    xv = x_ref[...].astype(jnp.float32) + jnp.float32(eps)
    e = xv * jnp.log(xv)                       # log -> EUP slot, mul -> VPU
    # Leading-axis reduce = elementwise vreg adds only (VPU); the single
    # cross-lane/cross-sublane reduction happens once, in the wrapper.
    o_ref[...] += jnp.sum(e, axis=0, keepdims=True)


def entropy_loss(x, eps=1e-20):
    """x: (N, C, H, W). Returns scalar float32: -sum((x+eps)*log(x+eps)) / (N*C)."""
    n, c, h, w = x.shape
    m_total = n * c

    flat = x.reshape(-1)
    total = flat.shape[0]
    itemsize = x.dtype.itemsize

    groups = -(-total // _GROUP_ELEMS)                          # ceil
    tile_groups = max(1, min(_TILE_ELEMS_BUDGET // _GROUP_ELEMS, groups))
    num_chunks = 2 if groups >= 2 * tile_groups else 1          # v7x: 2 TCs
    steps = -(-groups // (num_chunks * tile_groups))
    groups_padded = num_chunks * steps * tile_groups
    padded_total = groups_padded * _GROUP_ELEMS

    pad_count = padded_total - total
    if pad_count:
        # Pad with 1.0: (1+eps)*log(1+eps) == 0 exactly in f32 for tiny eps;
        # any residual is subtracted analytically after the kernel.
        flat = jnp.concatenate([flat, jnp.ones((pad_count,), dtype=x.dtype)])
    x3 = flat.reshape(groups_padded, _SUBLANES, _LANES)

    kernel = functools.partial(_entropy_kernel, eps=eps)

    partial_sums = pl.pallas_call(
        kernel,
        out_shape=jax.ShapeDtypeStruct((num_chunks, _SUBLANES, _LANES),
                                       jnp.float32),
        grid_spec=pltpu.PrefetchScalarGridSpec(
            num_scalar_prefetch=0,
            grid=(num_chunks, steps),
            in_specs=[pl.BlockSpec(
                (tile_groups, _SUBLANES, _LANES),
                lambda ci, si: (ci * steps + si, 0, 0))],
            out_specs=pl.BlockSpec(
                (1, _SUBLANES, _LANES), lambda ci, si: (ci, 0, 0)),
        ),
        compiler_params=pltpu.CompilerParams(
            dimension_semantics=("parallel", "arbitrary"),
            vmem_limit_bytes=32 * 1024 * 1024,
        ),
        cost_estimate=pl.CostEstimate(
            flops=3 * padded_total,
            transcendentals=padded_total,
            bytes_accessed=padded_total * itemsize
            + num_chunks * _GROUP_ELEMS * 4,
        ),
    )(x3)

    total_sum = jnp.sum(partial_sums)
    if pad_count:
        # Exact analytic removal of the padded elements' contribution
        # (zero for the default eps=1e-20, nonzero only for large eps).
        pad_val = jnp.float32(1.0) + jnp.float32(eps)
        total_sum = total_sum - jnp.float32(pad_count) * pad_val * jnp.log(pad_val)
    return -total_sum / jnp.float32(m_total)


if __name__ == "__main__":
    key = jax.random.PRNGKey(0)
    # Small shapes consistent with the module: N=2, C=4, H=W=16.
    x = jax.random.uniform(
        key, (2, 4, 16, 16), dtype=jnp.float32, minval=0.0, maxval=1.0
    )

    loss = jax.block_until_ready(entropy_loss(x))

    # Pure-JAX reference of the PyTorch forward.
    eps = 1e-20
    x2 = x.reshape(-1, x.shape[2] * x.shape[3]) + eps
    ref = -(x2 * jnp.log(x2)).sum() / x2.shape[0]

    assert jnp.allclose(loss, ref, rtol=1e-5, atol=1e-5), (loss, ref)
    print("KERNEL_OK")
</pallas_src>

<mosaic_0001>
module attributes {stable_mosaic.version = 11 : i64} {
  func.func @_entropy_kernel(%arg0: i32, %arg1: i32, %arg2: memref<1x8x1024xf32, #tpu.memory_space<vmem>>, %arg3: memref<1x8x1024xf32, #tpu.memory_space<vmem>>) attributes {dimension_semantics = [#tpu.dimension_semantics<parallel>, #tpu.dimension_semantics<arbitrary>], iteration_bounds = array<i64: 1, 1>, scalar_prefetch = 0 : i64, scratch_operands = 0 : i64, tpu.core_type = #tpu.core_type<tc>, window_params = [{transform_indices = @transform_0, window_bounds = array<i64: 1, 8, 1024>}, {transform_indices = @transform_1, window_bounds = array<i64: 1, 8, 1024>}]} {
    %c0_i32 = arith.constant 0 : i32
    %0 = arith.cmpi eq, %arg1, %c0_i32 : i32
    %1 = arith.extui %0 : i1 to i32
    %c0_i32_0 = arith.constant 0 : i32
    %2 = arith.cmpi ne, %1, %c0_i32_0 : i32
    scf.if %2 {
      %cst_10 = arith.constant 0.000000e+00 : f32
      %13 = vector.broadcast %cst_10 : f32 to vector<1x8x1024xf32>
      %c0_11 = arith.constant 0 : index
      %c0_12 = arith.constant 0 : index
      %c0_13 = arith.constant 0 : index
      %14 = vector.load %arg3[%c0_11, %c0_12, %c0_13] : memref<1x8x1024xf32, #tpu.memory_space<vmem>>, vector<1x8x1024xf32>
      tpu.vector_store %arg3[%c0_11, %c0_12, %c0_13], %13 {strides = array<i32>} : memref<1x8x1024xf32, #tpu.memory_space<vmem>>, vector<1x8x1024xf32>,
    } else {
    }
    %c0 = arith.constant 0 : index
    %c0_1 = arith.constant 0 : index
    %c0_2 = arith.constant 0 : index
    %3 = vector.load %arg2[%c0, %c0_1, %c0_2] : memref<1x8x1024xf32, #tpu.memory_space<vmem>>, vector<1x8x1024xf32>
    %cst = arith.constant 9.99999968E-21 : f32
    %4 = vector.broadcast %cst : f32 to vector<1x8x1024xf32>
    %5 = arith.addf %3, %4 : vector<1x8x1024xf32>
    %6 = math.log %5 : vector<1x8x1024xf32>
    %7 = arith.mulf %5, %6 : vector<1x8x1024xf32>
    %c0_3 = arith.constant 0 : index
    %c0_4 = arith.constant 0 : index
    %c0_5 = arith.constant 0 : index
    %8 = vector.load %arg3[%c0_3, %c0_4, %c0_5] : memref<1x8x1024xf32, #tpu.memory_space<vmem>>, vector<1x8x1024xf32>
    %cst_6 = arith.constant dense<0.000000e+00> : vector<8x1024xf32>
    %9 = vector.multi_reduction <add>, %7, %cst_6 [0] : vector<1x8x1024xf32> to vector<8x1024xf32>
    %10 = vector.shape_cast %9 : vector<8x1024xf32> to vector<1x8x1024xf32>
    %11 = arith.addf %8, %10 : vector<1x8x1024xf32>
    %c0_7 = arith.constant 0 : index
    %c0_8 = arith.constant 0 : index
    %c0_9 = arith.constant 0 : index
    %12 = vector.load %arg3[%c0_7, %c0_8, %c0_9] : memref<1x8x1024xf32, #tpu.memory_space<vmem>>, vector<1x8x1024xf32>
    tpu.vector_store %arg3[%c0_7, %c0_8, %c0_9], %11 {strides = array<i32>} : memref<1x8x1024xf32, #tpu.memory_space<vmem>>, vector<1x8x1024xf32>,
    return
  }
  func.func @transform_0(%arg0: i32, %arg1: i32) -> (i32, i32, i32) {
    %c1_i32 = arith.constant 1 : i32
    %0 = arith.muli %arg0, %c1_i32 : i32
    %1 = arith.addi %0, %arg1 : i32
    %c0_i32 = arith.constant 0 : i32
    %c0_i32_0 = arith.constant 0 : i32
    %c0_i32_1 = arith.constant 0 : i32
    return %1, %c0_i32, %c0_i32_0 : i32, i32, i32
  }
  func.func @transform_1(%arg0: i32, %arg1: i32) -> (i32, i32, i32) {
    %c0_i32 = arith.constant 0 : i32
    %c0_i32_0 = arith.constant 0 : i32
    %c0_i32_1 = arith.constant 0 : i32
    return %arg0, %c0_i32, %c0_i32_0 : i32, i32, i32
  }
}

</mosaic_0001>

<llo_original>
// kernel: tpu_custom_call.1
$region0: #{tpu_custom_call.1}
  #allocation0 [shape = 'u32[]', space=smem, size = 0x4, offset = 0x4, fixed_abs, tag = 'smem constant byte address 0x4 - core index']
  #allocation1 [shape = 'u32[144,128]{1,0:T(1,128)}', space=vmem, size = 0x12000, scoped, tag = 'internal scratch']
  %s0 = inlined_call_operand.hbm [shape: f32[1,8,1024], index: 0, kind: input, shape index: {}]
  %s1 = inlined_call_operand.hbm [shape: f32[1,8,1024], index: 1, kind: output, shape index: {}]
  %s2 = sld [smem:[#allocation0]]
  $region22: #{tpu_custom_call.1} parent=0
    _
  %s4 = ssub.s32 1, %s2
  %s5 = scalar_select 0, %s4, %s2
  $region1: #{tpu_custom_call.1} parent=0
    #allocation2 [shape = 'u8[32768]{0}', space=vmem, size = 0x8000, scoped, tag = 'input window, operand 0, single buffered']
    #allocation3 [shape = 's32[1]{0}', space=sflag, size = 0x4, scoped, tag = 'scoped memory for tpu_custom_call.1']
    #allocation4 [shape = 's32[1]{0}', space=sflag, size = 0x4, scoped, tag = 'scoped memory for tpu_custom_call.1']
    #allocation5 [shape = 'u8[32768]{0}', space=vmem, size = 0x8000, scoped, tag = 'output window, operand 0, single buffered']
    %6 = vsyncpa [#allocation3], 0
    %7 = vsyncpa [#allocation4], 0
    // Predicated region
    $region2: #{tpu_custom_call.1} parent=1 // pred_check
      _
    $region3: #{tpu_custom_call.1} parent=1 // pred_check_branch
      %9 = sbr.rel (0) target = $region5
    $region4: #{tpu_custom_call.1} parent=1 // pred_region
      %s10 = sadd.s32 0, 0
      %s12 = ssub.s32 1024, 1024
      %13 = vsyncadd [#allocation3], %s12
      %s14 = smul.addr %s10, 8
      %s15 = smul.addr %s14, 128
      %s16 = scalar_lea.hbm %s0, %s15
      %s18 = sshll.u32 [#allocation2], 4
      %s19 = int_to_ptr.vmem [resolvable:$true] %s18
      %21 = dma.hbm_to_vmem [thread:$0]  %s16, 1024, %s19, [#allocation3]
    $region5: #{tpu_custom_call.1} parent=1 // pred_fallthru
      _
    // Predicated region
    $region6: #{tpu_custom_call.1} parent=1 // pred_check
      _
    $region7: #{tpu_custom_call.1} parent=1 // pred_check_branch
      %23 = sbr.rel (0) target = $region9
    $region8: #{tpu_custom_call.1} parent=1 // pred_region
      %24 = dma.done [#allocation3], 1024
    $region9: #{tpu_custom_call.1} parent=1 // pred_fallthru
      _
    %s25 = sadd.s32 0, 0
    %p26 = scmp.eq.s32.totalorder 0, 0
    // Predicated region
    $region10: #{tpu_custom_call.1} parent=1 // pred_check
      %p27 = pneg %p26
    $region11: #{tpu_custom_call.1} parent=1 // pred_check_branch
      %29 = sbr.rel (%p27) target = $region13
    $region12: #{tpu_custom_call.1} parent=1 // pred_region
      %30 = vst [vmem:[#allocation5] sm:$0xff] 0.0
      %31 = vst [vmem:[#allocation5 + $0x8] sm:$0xff] 0.0
      %32 = vst [vmem:[#allocation5 + $0x10] sm:$0xff] 0.0
      %33 = vst [vmem:[#allocation5 + $0x18] sm:$0xff] 0.0
      %34 = vst [vmem:[#allocation5 + $0x20] sm:$0xff] 0.0
      %35 = vst [vmem:[#allocation5 + $0x28] sm:$0xff] 0.0
      %36 = vst [vmem:[#allocation5 + $0x30] sm:$0xff] 0.0
      %37 = vst [vmem:[#allocation5 + $0x38] sm:$0xff] 0.0
    $region13: #{tpu_custom_call.1} parent=1 // pred_fallthru
      _
    %v38 = vld [vmem:[#allocation2] sm:$0xff]
    %v39 = vld [vmem:[#allocation2 + $0x8] sm:$0xff]
    %v40 = vld [vmem:[#allocation2 + $0x10] sm:$0xff]
    %v41 = vld [vmem:[#allocation2 + $0x18] sm:$0xff]
    %v42 = vld [vmem:[#allocation2 + $0x20] sm:$0xff]
    %v43 = vld [vmem:[#allocation2 + $0x28] sm:$0xff]
    %v44 = vld [vmem:[#allocation2 + $0x30] sm:$0xff]
    %v45 = vld [vmem:[#allocation2 + $0x38] sm:$0xff]
    %v46 = vadd.f32 %v38, 1e-20
    %v47 = vadd.f32 %v39, 1e-20
    %v48 = vadd.f32 %v40, 1e-20
    %v49 = vadd.f32 %v41, 1e-20
    %v50 = vadd.f32 %v42, 1e-20
    %v51 = vadd.f32 %v43, 1e-20
    %v52 = vadd.f32 %v44, 1e-20
    %v53 = vadd.f32 %v45, 1e-20
    %v54 = vlog2.pop %v46
    %v55 = vmul.f32 %v54, 0.6931472
    %v56 = vlog2.pop %v47
    %v57 = vmul.f32 %v56, 0.6931472
    %v58 = vlog2.pop %v48
    %v59 = vmul.f32 %v58, 0.6931472
    %v60 = vlog2.pop %v49
    %v61 = vmul.f32 %v60, 0.6931472
    %v62 = vlog2.pop %v50
    %v63 = vmul.f32 %v62, 0.6931472
    %v64 = vlog2.pop %v51
    %v65 = vmul.f32 %v64, 0.6931472
    %v66 = vlog2.pop %v52
    %v67 = vmul.f32 %v66, 0.6931472
    %v68 = vlog2.pop %v53
    %v69 = vmul.f32 %v68, 0.6931472
    %v70 = vmul.f32 %v46, %v55
    %v71 = vmul.f32 %v47, %v57
    %v72 = vmul.f32 %v48, %v59
    %v73 = vmul.f32 %v49, %v61
    %v74 = vmul.f32 %v50, %v63
    %v75 = vmul.f32 %v51, %v65
    %v76 = vmul.f32 %v52, %v67
    %v77 = vmul.f32 %v53, %v69
    %v78 = vld [vmem:[#allocation5] sm:$0xff]
    %v79 = vld [vmem:[#allocation5 + $0x8] sm:$0xff]
    %v80 = vld [vmem:[#allocation5 + $0x10] sm:$0xff]
    %v81 = vld [vmem:[#allocation5 + $0x18] sm:$0xff]
    %v82 = vld [vmem:[#allocation5 + $0x20] sm:$0xff]
    %v83 = vld [vmem:[#allocation5 + $0x28] sm:$0xff]
    %v84 = vld [vmem:[#allocation5 + $0x30] sm:$0xff]
    %v85 = vld [vmem:[#allocation5 + $0x38] sm:$0xff]
    %v86 = vadd.f32 %v70, 0.0
    %v87 = vadd.f32 %v71, 0.0
    %v88 = vadd.f32 %v72, 0.0
    %v89 = vadd.f32 %v73, 0.0
    %v90 = vadd.f32 %v74, 0.0
    %v91 = vadd.f32 %v75, 0.0
    %v92 = vadd.f32 %v76, 0.0
    %v93 = vadd.f32 %v77, 0.0
    %v94 = vadd.f32 %v78, %v86
    %v95 = vadd.f32 %v79, %v87
    %v96 = vadd.f32 %v80, %v88
    %v97 = vadd.f32 %v81, %v89
    %v98 = vadd.f32 %v82, %v90
    %v99 = vadd.f32 %v83, %v91
    %v100 = vadd.f32 %v84, %v92
    %v101 = vadd.f32 %v85, %v93
    %102 = vst [vmem:[#allocation5] sm:$0xff] %v94
    %103 = vst [vmem:[#allocation5 + $0x8] sm:$0xff] %v95
    %104 = vst [vmem:[#allocation5 + $0x10] sm:$0xff] %v96
    %105 = vst [vmem:[#allocation5 + $0x18] sm:$0xff] %v97
    %106 = vst [vmem:[#allocation5 + $0x20] sm:$0xff] %v98
    %107 = vst [vmem:[#allocation5 + $0x28] sm:$0xff] %v99
    %108 = vst [vmem:[#allocation5 + $0x30] sm:$0xff] %v100
    %109 = vst [vmem:[#allocation5 + $0x38] sm:$0xff] %v101
    // Predicated region
    $region14: #{tpu_custom_call.1} parent=1 // pred_check
      _
    $region15: #{tpu_custom_call.1} parent=1 // pred_check_branch
      %111 = sbr.rel (0) target = $region17
    $region16: #{tpu_custom_call.1} parent=1 // pred_region
      %s113 = ssub.s32 1024, 1024
      %114 = vsyncadd [#allocation4], %s113
      %s116 = sshll.u32 [#allocation5], 4
      %s117 = int_to_ptr.vmem [resolvable:$true] %s116
      %119 = dma.vmem_to_hbm [thread:$0]  %s117, 1024, %s1, [#allocation4]
    $region17: #{tpu_custom_call.1} parent=1 // pred_fallthru
      _
    // Predicated region
    $region18: #{tpu_custom_call.1} parent=1 // pred_check
      _
    $region19: #{tpu_custom_call.1} parent=1 // pred_check_branch
      %121 = sbr.rel (0) target = $region21
    $region20: #{tpu_custom_call.1} parent=1 // pred_region
      %122 = dma.done [#allocation4], 1024
    $region21: #{tpu_custom_call.1} parent=1 // pred_fallthru
      _
    %123 = vsyncpa [#allocation3], 1
    %124 = vsyncpa [#allocation4], 1

</llo_original>
